<compile_context>
chip_gen: v6e
topology: v6e:2x2x1
jax: 0.10.0
libtpu: 0.0.40
codegen_flags: <defaults>
</compile_context>

<pallas_src>
import functools
import math

import jax
import jax.numpy as jnp
from jax.experimental import pallas as pl
from jax.experimental.pallas import tpu as pltpu

_LANE = 128  # vreg lane width


def _round_up(x, m):
    return ((x + m - 1) // m) * m


def _pad2(x, rows, cols):
    r, c = x.shape
    return jnp.pad(x, ((0, rows - r), (0, cols - c)))


def _tpu_vmem_budgets():
    """(vmem_limit_bytes, fused_path_budget_bytes), generation-aware."""
    cap = None
    try:
        info = pltpu.get_tpu_info()
        for attr in ("vmem_capacity_bytes", "vmem_bytes", "vmem_size_bytes"):
            v = getattr(info, attr, None)
            if v:
                cap = int(v)
                break
    except Exception:
        cap = None
    if cap is None:
        cap = 64 * 1024 * 1024          # conservative default (v7x per-TC VMEM)
    if cap >= 100 * 1024 * 1024:        # v5e / v6e: 128 MiB per TensorCore
        return 100 * 1024 * 1024, 72 * 1024 * 1024
    # v7x: 64 MiB per TC; keep headroom.  Tiled path megacore-shards its rows.
    return 56 * 1024 * 1024, 36 * 1024 * 1024


def _linear_tile(n_pad):
    for t in (1024, 512, 256, 128):
        if n_pad % t == 0:
            return t
    return n_pad


def _buffered_spec(shape, index_map, buffers):
    """BlockSpec with deeper pipelining if supported, plain spec otherwise."""
    try:
        return pl.BlockSpec(shape, index_map, pipeline_mode=pl.Buffered(buffers))
    except Exception:
        return pl.BlockSpec(shape, index_map)


# ---------------------------------------------------------------------------
# Fused layer-loop kernel: all GCN2 conv layers in one pallas_call.
# grid = (num_layers,); A_hat and x_0 live whole in VMEM for the entire grid,
# per-layer effective weights are streamed; running x is bf16 VMEM scratch.
# Boundary Linear layers are hoisted into separate tiled kernels.
# ---------------------------------------------------------------------------

def _gcn2_fused_kernel(a_ref, x0_ref, wl_ref, o_ref, x_sc, *, alpha):
    l = pl.program_id(0)

    @pl.when(l == 0)
    def _init():
        x_sc[...] = x0_ref[...]

    # propagate: h = A_hat @ x   (A_hat resident in VMEM across all layers)
    h = jnp.dot(a_ref[...], x_sc[...], preferred_element_type=jnp.float32)
    # initial-residual mix
    s = (1.0 - alpha) * h + alpha * x0_ref[...].astype(jnp.float32)
    # identity mapping: (1-b)*s + b*(s@W) == s @ ((1-b)I + bW)  (pre-folded weight)
    x_new = jnp.maximum(
        jnp.dot(s.astype(jnp.bfloat16), wl_ref[...],
                preferred_element_type=jnp.float32), 0.0).astype(jnp.bfloat16)
    x_sc[...] = x_new

    @pl.when(l == pl.num_programs(0) - 1)
    def _finalize():
        o_ref[...] = x_new


def pallas_gcn2_layers_fused(a_hat, h0, w_layers, *, alpha, vmem_limit):
    n_pad = a_hat.shape[0]
    c_pad = w_layers.shape[-1]
    num_layers = w_layers.shape[0]
    kernel = functools.partial(_gcn2_fused_kernel, alpha=float(alpha))
    cost = pl.CostEstimate(
        flops=num_layers * (2 * n_pad * n_pad * c_pad + 2 * n_pad * c_pad * c_pad),
        transcendentals=0,
        bytes_accessed=(n_pad * n_pad * 2 + 2 * n_pad * c_pad * 2
                        + num_layers * c_pad * c_pad * 2),
    )
    return pl.pallas_call(
        kernel,
        out_shape=jax.ShapeDtypeStruct((n_pad, c_pad), jnp.bfloat16),
        grid=(num_layers,),
        in_specs=[
            pl.BlockSpec(memory_space=pltpu.VMEM),                    # A_hat (resident)
            pl.BlockSpec(memory_space=pltpu.VMEM),                    # x_0   (resident)
            pl.BlockSpec((None, c_pad, c_pad), lambda l: (l, 0, 0)),  # per-layer W_eff
        ],
        out_specs=pl.BlockSpec(memory_space=pltpu.VMEM),
        scratch_shapes=[pltpu.VMEM((n_pad, c_pad), jnp.bfloat16)],    # running x (bf16)
        compiler_params=pltpu.CompilerParams(
            dimension_semantics=("arbitrary",),
            vmem_limit_bytes=vmem_limit),
        cost_estimate=cost,
    )(a_hat, h0, w_layers)


# ---------------------------------------------------------------------------
# Tiled kernels (general / large-N path)
# ---------------------------------------------------------------------------

def _gcn2_layer_kernel(a_ref, x_ref, x0_ref, w_ref, o_ref, acc_ref, *, alpha):
    k = pl.program_id(1)

    @pl.when(k == 0)
    def _init():
        acc_ref[...] = jnp.zeros_like(acc_ref)

    # partial propagate over this K block (bf16 operands, f32 accumulate)
    acc_ref[...] += jnp.dot(a_ref[...], x_ref[...],
                            preferred_element_type=jnp.float32)

    @pl.when(k == pl.num_programs(1) - 1)
    def _finalize():
        s = (1.0 - alpha) * acc_ref[...] + alpha * x0_ref[...].astype(jnp.float32)
        out = jnp.dot(s.astype(jnp.bfloat16), w_ref[...],
                      preferred_element_type=jnp.float32)
        o_ref[...] = jnp.maximum(out, 0.0).astype(o_ref.dtype)


def pallas_gcn2_layer_tiled(a_hat, x, x0, w_eff, *, alpha, tm, tk, vmem_limit):
    n_pad = a_hat.shape[0]
    c_pad = w_eff.shape[0]
    grid = (n_pad // tm, n_pad // tk)
    kernel = functools.partial(_gcn2_layer_kernel, alpha=float(alpha))
    cost = pl.CostEstimate(
        flops=2 * n_pad * n_pad * c_pad + 2 * n_pad * c_pad * c_pad,
        transcendentals=0,
        bytes_accessed=(n_pad * n_pad * 2 + 3 * n_pad * c_pad * 2
                        + c_pad * c_pad * 2),
    )
    return pl.pallas_call(
        kernel,
        out_shape=jax.ShapeDtypeStruct((n_pad, c_pad), jnp.bfloat16),
        grid=grid,
        in_specs=[
            # A tile: only stream whose block index changes every K step ->
            # deeper pipelining for extra DMA lookahead.
            _buffered_spec((tm, tk), lambda i, k: (i, k), buffers=3),
            pl.BlockSpec((tk, c_pad), lambda i, k: (k, 0)),     # x tile
            pl.BlockSpec((tm, c_pad), lambda i, k: (i, 0)),     # x0 (K-constant)
            pl.BlockSpec((c_pad, c_pad), lambda i, k: (0, 0)),  # W_eff (resident)
        ],
        out_specs=pl.BlockSpec((tm, c_pad), lambda i, k: (i, 0)),
        scratch_shapes=[pltpu.VMEM((tm, c_pad), jnp.float32)],
        compiler_params=pltpu.CompilerParams(
            dimension_semantics=("parallel", "arbitrary"),
            vmem_limit_bytes=vmem_limit),
        cost_estimate=cost,
    )(a_hat, x, x0, w_eff)


def _linear_kernel(x_ref, w_ref, b_ref, o_ref, *, relu):
    y = jnp.dot(x_ref[...], w_ref[...], preferred_element_type=jnp.float32)
    y = y + b_ref[...]
    if relu:
        y = jnp.maximum(y, 0.0)
    o_ref[...] = y.astype(o_ref.dtype)


def pallas_linear_tiled(x, w_t, b, *, relu, out_dtype, tm, vmem_limit):
    n_pad, in_pad = x.shape
    out_pad = w_t.shape[1]
    cost = pl.CostEstimate(
        flops=2 * n_pad * in_pad * out_pad,
        transcendentals=0,
        bytes_accessed=(n_pad * in_pad * x.dtype.itemsize
                        + in_pad * out_pad * w_t.dtype.itemsize
                        + n_pad * out_pad * jnp.dtype(out_dtype).itemsize),
    )
    return pl.pallas_call(
        functools.partial(_linear_kernel, relu=relu),
        out_shape=jax.ShapeDtypeStruct((n_pad, out_pad), out_dtype),
        grid=(n_pad // tm,),
        in_specs=[
            pl.BlockSpec((tm, in_pad), lambda i: (i, 0)),
            pl.BlockSpec((in_pad, out_pad), lambda i: (0, 0)),
            pl.BlockSpec((1, out_pad), lambda i: (0, 0)),
        ],
        out_specs=pl.BlockSpec((tm, out_pad), lambda i: (i, 0)),
        compiler_params=pltpu.CompilerParams(
            dimension_semantics=("parallel",),
            vmem_limit_bytes=vmem_limit),
        cost_estimate=cost,
    )(x, w_t, b)


# ---------------------------------------------------------------------------
# Glue: dense gcn_norm (add_remaining_self_loops + sym-normalization).
# TODO(synk): dense O(N^2) adjacency build; for very large graphs build it
# tile-wise / in bf16 instead.
# ---------------------------------------------------------------------------

def build_normalized_adjacency(edge_index, edge_weights, num_nodes,
                               use_edge_weights):
    row, col = edge_index[0], edge_index[1]            # source, target
    if use_edge_weights:
        w = edge_weights.astype(jnp.float32)
    else:
        w = jnp.ones_like(row, dtype=jnp.float32)
    # dense A with A[target, source] = w  (messages flow source -> target)
    a = jnp.zeros((num_nodes, num_nodes), jnp.float32).at[col, row].add(w)
    # add_remaining_self_loops: weight-1 self loops only where none exist.
    has_self = jnp.zeros((num_nodes,), jnp.float32).at[row].max(
        jnp.where(row == col, 1.0, 0.0))
    a = a + jnp.diag(1.0 - has_self)
    deg = a.sum(axis=1)
    dis = jnp.where(deg > 0, jax.lax.rsqrt(deg), 0.0)
    return dis[:, None] * a * dis[None, :]


# ---------------------------------------------------------------------------
# Model
# ---------------------------------------------------------------------------

class GCN2Pallas:
    def __init__(self, input_shape, output_shape, hidden_channels, num_layers,
                 dropout, alpha, shared_weights, use_edge_weights, key,
                 theta=0.5):
        assert shared_weights, "only shared_weights=True is implemented"
        self.alpha = float(alpha)
        self.theta = float(theta)
        self.dropout = dropout            # inference mode -> dropout is identity
        self.use_edge_weights = use_edge_weights
        self.num_layers = num_layers
        self.input_dim = input_shape
        self.hidden = hidden_channels
        self.output_dim = output_shape
        self.start_with_lin = input_shape != hidden_channels

        # generation-aware VMEM limit / fused budget
        self.vmem_limit, self.fused_budget = _tpu_vmem_budgets()

        # lane-dense padded dims
        self.in_pad = _round_up(input_shape, _LANE)
        self.c_pad = _round_up(hidden_channels, _LANE)
        self.out_pad = _round_up(output_shape, _LANE)

        # beta_l computed host-side with math.log (no device sync while tracing)
        self.betas = [math.log(self.theta / (l + 1) + 1.0)
                      for l in range(num_layers)]

        keys = jax.random.split(key, 2 + max(num_layers, 1))

        # input Linear (PyTorch convention: y = x @ W^T + b; store W^T padded, bf16)
        if self.start_with_lin:
            lim = 1.0 / math.sqrt(input_shape)
            w0 = jax.random.uniform(keys[0], (input_shape, hidden_channels),
                                    jnp.float32, -lim, lim)
        else:
            w0 = jnp.zeros((input_shape, hidden_channels), jnp.float32)  # unused
        self.w0 = _pad2(w0, self.in_pad, self.c_pad).astype(jnp.bfloat16)
        self.b0 = jnp.zeros((1, self.c_pad), jnp.float32)

        # per-layer effective conv weight: (1-beta_l)*I + beta_l*W_l   (glorot W_l)
        glim = math.sqrt(6.0 / (hidden_channels + hidden_channels))
        w_eff = []
        for l in range(num_layers):
            w = jax.random.uniform(keys[1 + l], (hidden_channels, hidden_channels),
                                   jnp.float32, -glim, glim)
            beta = self.betas[l]
            we = (1.0 - beta) * jnp.eye(hidden_channels, dtype=jnp.float32) + beta * w
            w_eff.append(_pad2(we, self.c_pad, self.c_pad))
        if num_layers > 0:
            self.w_layers = jnp.stack(w_eff, axis=0).astype(jnp.bfloat16)
        else:
            self.w_layers = jnp.zeros((0, self.c_pad, self.c_pad), jnp.bfloat16)

        # output Linear
        lim = 1.0 / math.sqrt(hidden_channels)
        wo = jax.random.uniform(keys[1 + max(num_layers, 1)],
                                (hidden_channels, output_shape),
                                jnp.float32, -lim, lim)
        self.wo = _pad2(wo, self.c_pad, self.out_pad).astype(jnp.bfloat16)
        self.bo = jnp.zeros((1, self.out_pad), jnp.float32)

    def __call__(self, x, edge_index, edge_weights, a_hat=None, force_tiled=False):
        # TODO(synk): training-mode F.dropout not implemented (inference path only).
        n = x.shape[0]
        if a_hat is None:   # graph-dependent only; can be precomputed & cached
            a_hat = build_normalized_adjacency(edge_index, edge_weights, n,
                                               self.use_edge_weights)
        vmem_limit = self.vmem_limit

        # estimated VMEM footprint of the fused (A-resident) path, including
        # headroom for Mosaic-materialized temporaries (h, s, relu output).
        n_pad_f = _round_up(max(n, 8), _LANE)
        fused_bytes = (n_pad_f * n_pad_f * 2                  # A_hat bf16 (resident)
                       + 3 * n_pad_f * self.c_pad * 2         # x_0 in + x scratch + out
                       + 2 * self.c_pad * self.c_pad * 2      # W_eff (double-buffered)
                       + 4 * n_pad_f * self.c_pad * 4)        # f32 temporaries headroom
        use_fused = (not force_tiled) and fused_bytes <= self.fused_budget

        if use_fused:
            n_pad = n_pad_f
            tm_l = _linear_tile(n_pad)
            a_p = _pad2(a_hat, n_pad, n_pad).astype(jnp.bfloat16)
            x_p = _pad2(x.astype(jnp.float32), n_pad, self.in_pad).astype(jnp.bfloat16)
            if self.start_with_lin:
                h0 = pallas_linear_tiled(x_p, self.w0, self.b0, relu=True,
                                         out_dtype=jnp.bfloat16, tm=tm_l,
                                         vmem_limit=vmem_limit)
            else:
                h0 = x_p   # in_pad == c_pad in this case
            if self.num_layers > 0:
                hid = pallas_gcn2_layers_fused(a_p, h0, self.w_layers,
                                               alpha=self.alpha,
                                               vmem_limit=vmem_limit)
            else:
                hid = h0
            out = pallas_linear_tiled(hid, self.wo, self.bo, relu=False,
                                      out_dtype=jnp.float32, tm=tm_l,
                                      vmem_limit=vmem_limit)
            return out[:n, :self.output_dim]

        # ---- general tiled path (large graphs) ----
        # size-adaptive tiles: bigger is better (per-step overhead / HBM bound),
        # but cap the padding waste for mid-size graphs.
        n_pad0 = _round_up(max(n, 8), 256)
        if n_pad0 >= 8192:
            tm, tk = 1024, 2048
        elif n_pad0 >= 2048:
            tm, tk = 512, 1024
        elif n_pad0 >= 1024:
            tm, tk = 512, 512
        else:
            tm, tk = 256, 256
        n_pad = _round_up(n_pad0, max(tm, tk))
        tm_l = _linear_tile(n_pad)

        a_p = _pad2(a_hat, n_pad, n_pad).astype(jnp.bfloat16)
        x_p = _pad2(x.astype(jnp.float32), n_pad, self.in_pad).astype(jnp.bfloat16)
        if self.start_with_lin:
            x_p = pallas_linear_tiled(x_p, self.w0, self.b0, relu=True,
                                      out_dtype=jnp.bfloat16, tm=tm_l,
                                      vmem_limit=vmem_limit)
        x0_p = x_p
        for l in range(self.num_layers):
            x_p = pallas_gcn2_layer_tiled(a_p, x_p, x0_p, self.w_layers[l],
                                          alpha=self.alpha, tm=tm, tk=tk,
                                          vmem_limit=vmem_limit)
        out = pallas_linear_tiled(x_p, self.wo, self.bo, relu=False,
                                  out_dtype=jnp.float32, tm=tm_l,
                                  vmem_limit=vmem_limit)
        return out[:n, :self.output_dim]


# ---------------------------------------------------------------------------
# main
# ---------------------------------------------------------------------------

if __name__ == "__main__":
    key = jax.random.PRNGKey(0)
    k_x, k_w, k_param = jax.random.split(key, 3)

    num_nodes = 16
    input_dim = 8
    hidden = 32
    output_dim = 4
    num_layers = 2

    # node features
    x = jax.random.normal(k_x, (num_nodes, input_dim), jnp.float32)

    # deterministic bidirectional ring graph as edge_index [2, E]
    src = jnp.arange(num_nodes, dtype=jnp.int32)
    dst = (src + 1) % num_nodes
    edge_index = jnp.concatenate(
        [jnp.stack([src, dst], axis=0), jnp.stack([dst, src], axis=0)], axis=1)
    edge_weights = jax.random.uniform(k_w, (edge_index.shape[1],), jnp.float32,
                                      0.5, 1.5)

    model = GCN2Pallas(input_shape=input_dim, output_shape=output_dim,
                       hidden_channels=hidden, num_layers=num_layers,
                       dropout=0.5, alpha=0.1, shared_weights=True,
                       use_edge_weights=True, key=k_param)

    # adjacency depends only on the graph -> compute once and reuse
    a_hat = build_normalized_adjacency(edge_index, edge_weights, num_nodes, True)

    out_fused = jax.block_until_ready(
        model(x, edge_index, edge_weights, a_hat=a_hat))
    out_tiled = jax.block_until_ready(
        model(x, edge_index, edge_weights, a_hat=a_hat, force_tiled=True))

    assert out_fused.shape == (num_nodes, output_dim)
    assert out_tiled.shape == (num_nodes, output_dim)
    assert not bool(jnp.isnan(out_fused).any())
    assert not bool(jnp.isnan(out_tiled).any())
    # both paths now run the same bf16/f32 math (layer outputs kept in bf16)
    assert float(jnp.max(jnp.abs(out_fused - out_tiled))) < 0.05
    print("KERNEL_OK")
</pallas_src>

<mosaic_0001>
module attributes {stable_mosaic.version = 11 : i64} {
  func.func @_linear_kernel(%arg0: i32, %arg1: memref<128x128xbf16, #tpu.memory_space<vmem>>, %arg2: memref<128x128xbf16, #tpu.memory_space<vmem>>, %arg3: memref<1x128xf32, #tpu.memory_space<vmem>>, %arg4: memref<128x128xbf16, #tpu.memory_space<vmem>>) attributes {dimension_semantics = [#tpu.dimension_semantics<parallel>], iteration_bounds = array<i64: 1>, scalar_prefetch = 0 : i64, scratch_operands = 0 : i64, tpu.core_type = #tpu.core_type<tc>, window_params = [{transform_indices = @transform_0, window_bounds = array<i64: 128, 128>}, {pipeline_mode = #tpu.pipeline_mode<synchronous>, transform_indices = @transform_1, window_bounds = array<i64: 128, 128>}, {pipeline_mode = #tpu.pipeline_mode<synchronous>, transform_indices = @transform_2, window_bounds = array<i64: 1, 128>}, {transform_indices = @transform_3, window_bounds = array<i64: 128, 128>}]} {
    %c0 = arith.constant 0 : index
    %c0_0 = arith.constant 0 : index
    %0 = vector.load %arg1[%c0, %c0_0] : memref<128x128xbf16, #tpu.memory_space<vmem>>, vector<128x128xbf16>
    %c0_1 = arith.constant 0 : index
    %c0_2 = arith.constant 0 : index
    %1 = vector.load %arg2[%c0_1, %c0_2] : memref<128x128xbf16, #tpu.memory_space<vmem>>, vector<128x128xbf16>
    %cst = arith.constant dense<0.000000e+00> : vector<128x128xf32>
    %2 = tpu.matmul %0, %1, %cst {dimension_numbers = #tpu.dot_dimension_numbers<[1], [0], [0], [1], [0, 0, 1, 1], [], []>} : vector<128x128xbf16>, vector<128x128xbf16>, vector<128x128xf32> -> vector<128x128xf32>
    %c0_3 = arith.constant 0 : index
    %c0_4 = arith.constant 0 : index
    %3 = vector.load %arg3[%c0_3, %c0_4] : memref<1x128xf32, #tpu.memory_space<vmem>>, vector<1x128xf32>
    %4 = vector.broadcast %3 : vector<1x128xf32> to vector<128x128xf32>
    %5 = arith.addf %2, %4 : vector<128x128xf32>
    %cst_5 = arith.constant 0.000000e+00 : f32
    %6 = vector.broadcast %cst_5 : f32 to vector<128x128xf32>
    %7 = arith.maximumf %5, %6 : vector<128x128xf32>
    %8 = arith.truncf %7 : vector<128x128xf32> to vector<128x128xbf16>
    %c0_6 = arith.constant 0 : index
    %c0_7 = arith.constant 0 : index
    %9 = vector.load %arg4[%c0_6, %c0_7] : memref<128x128xbf16, #tpu.memory_space<vmem>>, vector<128x128xbf16>
    tpu.vector_store %arg4[%c0_6, %c0_7], %8 {strides = array<i32>} : memref<128x128xbf16, #tpu.memory_space<vmem>>, vector<128x128xbf16>,
    return
  }
  func.func @transform_0(%arg0: i32) -> (i32, i32) {
    %c0_i32 = arith.constant 0 : i32
    %c0_i32_0 = arith.constant 0 : i32
    return %arg0, %c0_i32 : i32, i32
  }
  func.func @transform_1(%arg0: i32) -> (i32, i32) {
    %c0_i32 = arith.constant 0 : i32
    %c0_i32_0 = arith.constant 0 : i32
    %c0_i32_1 = arith.constant 0 : i32
    return %c0_i32, %c0_i32_0 : i32, i32
  }
  func.func @transform_2(%arg0: i32) -> (i32, i32) {
    %c0_i32 = arith.constant 0 : i32
    %c0_i32_0 = arith.constant 0 : i32
    %c0_i32_1 = arith.constant 0 : i32
    return %c0_i32, %c0_i32_0 : i32, i32
  }
  func.func @transform_3(%arg0: i32) -> (i32, i32) {
    %c0_i32 = arith.constant 0 : i32
    %c0_i32_0 = arith.constant 0 : i32
    return %arg0, %c0_i32 : i32, i32
  }
}

</mosaic_0001>

<llo_original>
// kernel: tpu_custom_call.1
$region0: #{tpu_custom_call.1}
  #allocation0 [shape = 'u32[]', space=smem, size = 0x4, offset = 0x4, fixed_abs, tag = 'smem constant byte address 0x4 - core index']
  #allocation1 [shape = 'u32[144,128]{1,0:T(1,128)}', space=vmem, size = 0x12000, scoped, tag = 'internal scratch']
  %s0 = inlined_call_operand.hbm [shape: bf16[128,128], index: 0, kind: input, shape index: {}]
  %s1 = inlined_call_operand.hbm [shape: bf16[128,128], index: 1, kind: input, shape index: {}]
  %s2 = inlined_call_operand.vmem [shape: f32[1,128], index: 2, kind: input, shape index: {}]
  %s3 = inlined_call_operand.hbm [shape: bf16[128,128], index: 3, kind: output, shape index: {}]
  %s4 = sld [smem:[#allocation0]]
  $region30: #{tpu_custom_call.1} parent=0
    _
  %s6 = ssub.s32 1, %s4
  %s7 = scalar_select 0, %s6, %s4
  $region1: #{tpu_custom_call.1} parent=0
    #allocation2 [shape = 'u8[32768]{0}', space=vmem, size = 0x8000, scoped, tag = 'input window, operand 0, single buffered']
    #allocation3 [shape = 's32[1]{0}', space=sflag, size = 0x4, scoped, tag = 'scoped memory for tpu_custom_call.1']
    #allocation4 [shape = 's32[1]{0}', space=sflag, size = 0x4, scoped, tag = 'scoped memory for tpu_custom_call.1']
    #allocation5 [shape = 'u8[32768]{0}', space=vmem, size = 0x8000, scoped, tag = 'input window, operand 1, single buffered']
    #allocation6 [shape = 's32[1]{0}', space=sflag, size = 0x4, scoped, tag = 'scoped memory for tpu_custom_call.1']
    #allocation7 [shape = 'u8[32768]{0}', space=vmem, size = 0x8000, scoped, tag = 'output window, operand 0, single buffered']
    %8 = vsyncpa [#allocation3], 0
    %9 = vsyncpa [#allocation6], 0
    %10 = vsyncpa [#allocation4], 0
    // Predicated region
    $region2: #{tpu_custom_call.1} parent=1 // pred_check
      _
    $region3: #{tpu_custom_call.1} parent=1 // pred_check_branch
      %12 = sbr.rel (0) target = $region5
    $region4: #{tpu_custom_call.1} parent=1 // pred_region
      %s14 = ssub.s32 1024, 1024
      %15 = vsyncadd [#allocation3], %s14
      %s16 = sshll.u32 [#allocation2], 4
      %s17 = int_to_ptr.vmem [resolvable:$true] %s16
      %22 = dma.hbm_to_vmem [thread:$0]  %s0, 1024, %s17, [#allocation3], 64, 64, 4
    $region5: #{tpu_custom_call.1} parent=1 // pred_fallthru
      _
    // Predicated region
    $region6: #{tpu_custom_call.1} parent=1 // pred_check
      _
    $region7: #{tpu_custom_call.1} parent=1 // pred_check_branch
      %24 = sbr.rel (0) target = $region9
    $region8: #{tpu_custom_call.1} parent=1 // pred_region
      %s26 = ssub.s32 1024, 1024
      %27 = vsyncadd [#allocation6], %s26
      %s28 = sshll.u32 [#allocation5], 4
      %s29 = int_to_ptr.vmem [resolvable:$true] %s28
      %34 = dma.hbm_to_vmem [thread:$0]  %s1, 1024, %s29, [#allocation6], 64, 64, 4
    $region9: #{tpu_custom_call.1} parent=1 // pred_fallthru
      _
    // Predicated region
    $region10: #{tpu_custom_call.1} parent=1 // pred_check
      _
    $region11: #{tpu_custom_call.1} parent=1 // pred_check_branch
      %36 = sbr.rel (0) target = $region13
    $region12: #{tpu_custom_call.1} parent=1 // pred_region
      _
    $region13: #{tpu_custom_call.1} parent=1 // pred_fallthru
      _
    // Predicated region
    $region14: #{tpu_custom_call.1} parent=1 // pred_check
      _
    $region15: #{tpu_custom_call.1} parent=1 // pred_check_branch
      %38 = sbr.rel (0) target = $region17
    $region16: #{tpu_custom_call.1} parent=1 // pred_region
      %39 = dma.done [#allocation3], 1024
    $region17: #{tpu_custom_call.1} parent=1 // pred_fallthru
      _
    // Predicated region
    $region18: #{tpu_custom_call.1} parent=1 // pred_check
      _
    $region19: #{tpu_custom_call.1} parent=1 // pred_check_branch
      %41 = sbr.rel (0) target = $region21
    $region20: #{tpu_custom_call.1} parent=1 // pred_region
      %42 = dma.done [#allocation6], 1024
    $region21: #{tpu_custom_call.1} parent=1 // pred_fallthru
      _
    %v44 = vld [vmem:[#allocation2] sm:$0xf]
    %v45 = vld [vmem:[#allocation2 + $0x4] sm:$0xf]
    %v46 = vld [vmem:[#allocation2 + $0x8] sm:$0xf]
    %v47 = vld [vmem:[#allocation2 + $0xc] sm:$0xf]
    %v48 = vld [vmem:[#allocation2 + $0x10] sm:$0xf]
    %v49 = vld [vmem:[#allocation2 + $0x14] sm:$0xf]
    %v50 = vld [vmem:[#allocation2 + $0x18] sm:$0xf]
    %v51 = vld [vmem:[#allocation2 + $0x1c] sm:$0xf]
    %v52 = vld [vmem:[#allocation2 + $0x20] sm:$0xf]
    %v53 = vld [vmem:[#allocation2 + $0x24] sm:$0xf]
    %v54 = vld [vmem:[#allocation2 + $0x28] sm:$0xf]
    %v55 = vld [vmem:[#allocation2 + $0x2c] sm:$0xf]
    %v56 = vld [vmem:[#allocation2 + $0x30] sm:$0xf]
    %v57 = vld [vmem:[#allocation2 + $0x34] sm:$0xf]
    %v58 = vld [vmem:[#allocation2 + $0x38] sm:$0xf]
    %v59 = vld [vmem:[#allocation2 + $0x3c] sm:$0xf]
    %v60 = vld [vmem:[#allocation5] sm:$0xf]
    %v61 = vld [vmem:[#allocation5 + $0x4] sm:$0xf]
    %v62 = vld [vmem:[#allocation5 + $0x8] sm:$0xf]
    %v63 = vld [vmem:[#allocation5 + $0xc] sm:$0xf]
    %v64 = vld [vmem:[#allocation5 + $0x10] sm:$0xf]
    %v65 = vld [vmem:[#allocation5 + $0x14] sm:$0xf]
    %v66 = vld [vmem:[#allocation5 + $0x18] sm:$0xf]
    %v67 = vld [vmem:[#allocation5 + $0x1c] sm:$0xf]
    %v68 = vld [vmem:[#allocation5 + $0x20] sm:$0xf]
    %v69 = vld [vmem:[#allocation5 + $0x24] sm:$0xf]
    %v70 = vld [vmem:[#allocation5 + $0x28] sm:$0xf]
    %v71 = vld [vmem:[#allocation5 + $0x2c] sm:$0xf]
    %v72 = vld [vmem:[#allocation5 + $0x30] sm:$0xf]
    %v73 = vld [vmem:[#allocation5 + $0x34] sm:$0xf]
    %v74 = vld [vmem:[#allocation5 + $0x38] sm:$0xf]
    %v75 = vld [vmem:[#allocation5 + $0x3c] sm:$0xf]
    %v76 = vld [vmem:[%s2] sm:$0x1]
    %v78 = vlaneseq
    %v79 = vshrl.u32 %v78, 7
    %v80 = vsub.s32 0, %v79
    %v81 = vrot.slane %v76, %v80
    %v99 = vunpack.c.l.b16 %v44
    %v100 = vunpack.c.l.b16 %v45
    %v101 = vunpack.c.l.b16 %v46
    %v102 = vunpack.c.l.b16 %v47
    %v103 = vunpack.c.l.b16 %v48
    %v104 = vunpack.c.l.b16 %v49
    %v105 = vunpack.c.l.b16 %v50
    %v106 = vunpack.c.l.b16 %v51
    %v107 = vunpack.c.l.b16 %v52
    %v108 = vunpack.c.l.b16 %v53
    %v109 = vunpack.c.l.b16 %v54
    %v110 = vunpack.c.l.b16 %v55
    %v111 = vunpack.c.l.b16 %v56
    %v112 = vunpack.c.l.b16 %v57
    %v113 = vunpack.c.l.b16 %v58
    %v114 = vunpack.c.l.b16 %v59
    %v115 = vpack.c.b16 %v100, %v99
    %v116 = vpack.c.b16 %v102, %v101
    %v117 = vpack.c.b16 %v104, %v103
    %v118 = vpack.c.b16 %v106, %v105
    %v119 = vpack.c.b16 %v108, %v107
    %v120 = vpack.c.b16 %v110, %v109
    %v121 = vpack.c.b16 %v112, %v111
    %v122 = vpack.c.b16 %v114, %v113
    %v147 = vunpack.c.l.b16 %v60
    %v148 = vunpack.c.l.b16 %v61
    %v149 = vunpack.c.l.b16 %v62
    %v150 = vunpack.c.l.b16 %v63
    %v151 = vunpack.c.l.b16 %v64
    %v152 = vunpack.c.l.b16 %v65
    %v153 = vunpack.c.l.b16 %v66
    %v154 = vunpack.c.l.b16 %v67
    %v155 = vunpack.c.l.b16 %v68
    %v156 = vunpack.c.l.b16 %v69
    %v157 = vunpack.c.l.b16 %v70
    %v158 = vunpack.c.l.b16 %v71
    %v159 = vunpack.c.l.b16 %v72
    %v160 = vunpack.c.l.b16 %v73
    %v161 = vunpack.c.l.b16 %v74
    %v162 = vunpack.c.l.b16 %v75
    %v163 = vpack.c.b16 %v148, %v147
    %v164 = vpack.c.b16 %v150, %v149
    %v165 = vpack.c.b16 %v152, %v151
    %v166 = vpack.c.b16 %v154, %v153
    %v167 = vpack.c.b16 %v156, %v155
    %v168 = vpack.c.b16 %v158, %v157
    %v169 = vpack.c.b16 %v160, %v159
    %v170 = vpack.c.b16 %v162, %v161
    %179 = vmatprep.subr.bf16.mxu0 0
    %180 = vmatpush1.bf16.msra.mxu0 %v170
    %181 = vmatprep.subr.bf16.mxu0 0
    %182 = vmatpush1.bf16.msra.mxu0 %v169
    %183 = vmatprep.subr.bf16.mxu0 0
    %184 = vmatpush1.bf16.msra.mxu0 %v168
    %185 = vmatprep.subr.bf16.mxu0 0
    %186 = vmatpush1.bf16.msra.mxu0 %v167
    %187 = vmatprep.subr.bf16.mxu0 0
    %188 = vmatpush1.bf16.msra.mxu0 %v166
    %189 = vmatprep.subr.bf16.mxu0 0
    %190 = vmatpush1.bf16.msra.mxu0 %v165
    %191 = vmatprep.subr.bf16.mxu0 0
    %192 = vmatpush1.bf16.msra.mxu0 %v164
    %193 = vmatprep.subr.bf16.mxu0 0
    %194 = vmatpush1.bf16.msra.mxu0 %v163
    %195 = vmatprep.subr.bf16.mxu0 0
    %196 = vmatpush2.bf16.msra.mxu0 0
    %197 = vmatprep.subr.bf16.mxu0 0
    %198 = vmatpush2.bf16.msra.mxu0 0
    %199 = vmatprep.subr.bf16.mxu0 0
    %200 = vmatpush2.bf16.msra.mxu0 0
    %201 = vmatprep.subr.bf16.mxu0 0
    %202 = vmatpush2.bf16.msra.mxu0 0
    %203 = vmatprep.subr.bf16.mxu0 0
    %204 = vmatpush2.bf16.msra.mxu0 0
    %205 = vmatprep.subr.bf16.mxu0 0
    %206 = vmatpush2.bf16.msra.mxu0 0
    %207 = vmatprep.subr.bf16.mxu0 0
    %208 = vmatpush2.bf16.msra.mxu0 0
    %209 = vmatprep.subr.bf16.mxu0 0
    %210 = vmatpush2.bf16.msra.mxu0 0
    %211 = vmatprep.mubr.bf16.mxu0 0
    %212 = vmatmul.mubr.bf16.gmra.mxu0 %v115
    %v213 = vpop.f32.mrf.mxu0
    %v214 = vadd.f32 %v81, %v213
    %v215 = vpop.f32.mrf.mxu0
    %v216 = vpop.f32.mrf.mxu0
    %v217 = vadd.f32 %v81, %v216
    %v218 = vpop.f32.mrf.mxu0
    %219 = vmatprep.mubr.bf16.mxu0 0
    %220 = vmatmul.mubr.bf16.gmra.mxu0 %v116
    %v221 = vpop.f32.mrf.mxu0
    %v222 = vadd.f32 %v81, %v221
    %v223 = vpop.f32.mrf.mxu0
    %v224 = vpop.f32.mrf.mxu0
    %v225 = vadd.f32 %v81, %v224
    %v226 = vpop.f32.mrf.mxu0
    %227 = vmatprep.mubr.bf16.mxu0 0
    %228 = vmatmul.mubr.bf16.gmra.mxu0 %v117
    %v229 = vpop.f32.mrf.mxu0
    %v230 = vadd.f32 %v81, %v229
    %v231 = vpop.f32.mrf.mxu0
    %v232 = vpop.f32.mrf.mxu0
    %v233 = vadd.f32 %v81, %v232
    %v234 = vpop.f32.mrf.mxu0
    %235 = vmatprep.mubr.bf16.mxu0 0
    %236 = vmatmul.mubr.bf16.gmra.mxu0 %v118
    %v237 = vpop.f32.mrf.mxu0
    %v238 = vadd.f32 %v81, %v237
    %v239 = vpop.f32.mrf.mxu0
    %v240 = vpop.f32.mrf.mxu0
    %v241 = vadd.f32 %v81, %v240
    %v242 = vpop.f32.mrf.mxu0
    %243 = vmatprep.mubr.bf16.mxu0 0
    %244 = vmatmul.mubr.bf16.gmra.mxu0 %v119
    %v245 = vpop.f32.mrf.mxu0
    %v246 = vadd.f32 %v81, %v245
    %v247 = vpop.f32.mrf.mxu0
    %v248 = vpop.f32.mrf.mxu0
    %v249 = vadd.f32 %v81, %v248
    %v250 = vpop.f32.mrf.mxu0
    %251 = vmatprep.mubr.bf16.mxu0 0
    %252 = vmatmul.mubr.bf16.gmra.mxu0 %v120
    %v253 = vpop.f32.mrf.mxu0
    %v254 = vadd.f32 %v81, %v253
    %v255 = vpop.f32.mrf.mxu0
    %v256 = vpop.f32.mrf.mxu0
    %v257 = vadd.f32 %v81, %v256
    %v258 = vpop.f32.mrf.mxu0
    %259 = vmatprep.mubr.bf16.mxu0 0
    %260 = vmatmul.mubr.bf16.gmra.mxu0 %v121
    %v261 = vpop.f32.mrf.mxu0
    %v262 = vadd.f32 %v81, %v261
    %v263 = vpop.f32.mrf.mxu0
    %v264 = vpop.f32.mrf.mxu0
    %v265 = vadd.f32 %v81, %v264
    %v266 = vpop.f32.mrf.mxu0
    %267 = vmatprep.mubr.bf16.mxu0 0
    %268 = vmatmul.mubr.bf16.gmra.mxu0 %v122
    %v269 = vpop.f32.mrf.mxu0
    %v270 = vadd.f32 %v81, %v269
    %v271 = vpop.f32.mrf.mxu0
    %v272 = vpop.f32.mrf.mxu0
    %v273 = vadd.f32 %v81, %v272
    %v274 = vpop.f32.mrf.mxu0
    %275 = vdwg.mxu0
    %v276 = vmax.f32 %v214, 0.0
    %v277 = vmax.f32 %v217, 0.0
    %v278 = vmax.f32 %v222, 0.0
    %v279 = vmax.f32 %v225, 0.0
    %v280 = vmax.f32 %v230, 0.0
    %v281 = vmax.f32 %v233, 0.0
    %v282 = vmax.f32 %v238, 0.0
    %v283 = vmax.f32 %v241, 0.0
    %v284 = vmax.f32 %v246, 0.0
    %v285 = vmax.f32 %v249, 0.0
    %v286 = vmax.f32 %v254, 0.0
    %v287 = vmax.f32 %v257, 0.0
    %v288 = vmax.f32 %v262, 0.0
    %v289 = vmax.f32 %v265, 0.0
    %v290 = vmax.f32 %v270, 0.0
    %v291 = vmax.f32 %v273, 0.0
    %v292 = vpack.c.bf16 %v277, %v276
    %v293 = vpack.c.bf16 %v279, %v278
    %v294 = vpack.c.bf16 %v281, %v280
    %v295 = vpack.c.bf16 %v283, %v282
    %v296 = vpack.c.bf16 %v285, %v284
    %v297 = vpack.c.bf16 %v287, %v286
    %v298 = vpack.c.bf16 %v289, %v288
    %v299 = vpack.c.bf16 %v291, %v290
    %v308 = vunpack.c.l.b16 %v292
    %v309 = vunpack.c.h.b16 %v292
    %v310 = vunpack.c.l.b16 %v293
    %v311 = vunpack.c.h.b16 %v293
    %v312 = vunpack.c.l.b16 %v294
    %v313 = vunpack.c.h.b16 %v294
    %v314 = vunpack.c.l.b16 %v295
    %v315 = vunpack.c.h.b16 %v295
    %v316 = vunpack.c.l.b16 %v296
    %v317 = vunpack.c.h.b16 %v296
    %v318 = vunpack.c.l.b16 %v297
    %v319 = vunpack.c.h.b16 %v297
    %v320 = vunpack.c.l.b16 %v298
    %v321 = vunpack.c.h.b16 %v298
    %v322 = vunpack.c.l.b16 %v299
    %v323 = vunpack.c.h.b16 %v299
    %v324 = vpack.c.b16 %v308, %v308
    %v325 = vpack.c.b16 %v309, %v309
    %v326 = vpack.c.b16 %v310, %v310
    %v327 = vpack.c.b16 %v311, %v311
    %v328 = vpack.c.b16 %v312, %v312
    %v329 = vpack.c.b16 %v313, %v313
    %v330 = vpack.c.b16 %v314, %v314
    %v331 = vpack.c.b16 %v315, %v315
    %v332 = vpack.c.b16 %v316, %v316
    %v333 = vpack.c.b16 %v317, %v317
    %v334 = vpack.c.b16 %v318, %v318
    %v335 = vpack.c.b16 %v319, %v319
    %v336 = vpack.c.b16 %v320, %v320
    %v337 = vpack.c.b16 %v321, %v321
    %v338 = vpack.c.b16 %v322, %v322
    %v339 = vpack.c.b16 %v323, %v323
    %356 = vst [vmem:[#allocation7] sm:$0xf] %v324
    %357 = vst [vmem:[#allocation7 + $0x4] sm:$0xf] %v325
    %358 = vst [vmem:[#allocation7 + $0x8] sm:$0xf] %v326
    %359 = vst [vmem:[#allocation7 + $0xc] sm:$0xf] %v327
    %360 = vst [vmem:[#allocation7 + $0x10] sm:$0xf] %v328
    %361 = vst [vmem:[#allocation7 + $0x14] sm:$0xf] %v329
    %362 = vst [vmem:[#allocation7 + $0x18] sm:$0xf] %v330
    %363 = vst [vmem:[#allocation7 + $0x1c] sm:$0xf] %v331
    %364 = vst [vmem:[#allocation7 + $0x20] sm:$0xf] %v332
    %365 = vst [vmem:[#allocation7 + $0x24] sm:$0xf] %v333
    %366 = vst [vmem:[#allocation7 + $0x28] sm:$0xf] %v334
    %367 = vst [vmem:[#allocation7 + $0x2c] sm:$0xf] %v335
    %368 = vst [vmem:[#allocation7 + $0x30] sm:$0xf] %v336
    %369 = vst [vmem:[#allocation7 + $0x34] sm:$0xf] %v337
    %370 = vst [vmem:[#allocation7 + $0x38] sm:$0xf] %v338
    %371 = vst [vmem:[#allocation7 + $0x3c] sm:$0xf] %v339
    // Predicated region
    $region22: #{tpu_custom_call.1} parent=1 // pred_check
      _
    $region23: #{tpu_custom_call.1} parent=1 // pred_check_branch
      %373 = sbr.rel (0) target = $region25
    $region24: #{tpu_custom_call.1} parent=1 // pred_region
      %s375 = ssub.s32 1024, 1024
      %376 = vsyncadd [#allocation4], %s375
      %s377 = sshll.u32 [#allocation7], 4
      %s378 = int_to_ptr.vmem [resolvable:$true] %s377
      %383 = dma.vmem_to_hbm [thread:$0]  %s378, 1024, %s3, [#allocation4], 64, 64, 4
    $region25: #{tpu_custom_call.1} parent=1 // pred_fallthru
      _
    // Predicated region
    $region26: #{tpu_custom_call.1} parent=1 // pred_check
      _
    $region27: #{tpu_custom_call.1} parent=1 // pred_check_branch
      %385 = sbr.rel (0) target = $region29
    $region28: #{tpu_custom_call.1} parent=1 // pred_region
      %386 = dma.done [#allocation4], 1024
    $region29: #{tpu_custom_call.1} parent=1 // pred_fallthru
      _
    %387 = vsyncpa [#allocation3], 1
    %388 = vsyncpa [#allocation6], 1
    %389 = vsyncpa [#allocation4], 1

</llo_original>
